<compile_context>
chip_gen: v7x
topology: tpu7x:2x2x1
jax: 0.10.0
libtpu: 0.0.40
codegen_flags: <defaults>
</compile_context>

<pallas_src>
import jax
import jax.numpy as jnp
from jax.experimental import pallas as pl
from jax.experimental.pallas import tpu as pltpu


# ---------------------------------------------------------------------------
# Kernel factory: whole forward pass fused (VPU layer-1, MXU layer-2,
# logit-difference layer-3 + sigmoid-softmax), chunked over the lane axis.
# Dropout(p=0.2) is identity in eval/inference mode, which is what we model.
# ---------------------------------------------------------------------------
def _make_kernel(lc: int, n_chunks: int):
    def kernel(xT_ref, w1_ref, b1_ref, w2_ref, b2_ref, w3d_ref, b3d_ref, o_ref):
        f32 = jnp.float32
        d1 = w1_ref.shape[0]          # 100
        d2 = w2_ref.shape[0]          # 50

        # Loop-invariant weight loads / broadcasts, hoisted once (JAX does not
        # CSE broadcast_in_dim, so do NOT re-emit these per chunk).
        w1c0 = jnp.broadcast_to(w1_ref[:, 0:1], (d1, lc))       # (100, lc)
        w1c1 = jnp.broadcast_to(w1_ref[:, 1:2], (d1, lc))       # (100, lc)
        b1b = jnp.broadcast_to(b1_ref[...], (d1, lc))           # (100, lc)
        b2b = jnp.broadcast_to(b2_ref[...], (d2, lc))           # (50, lc)
        b3db = jnp.broadcast_to(b3d_ref[...], (1, lc))          # (1, lc)
        w2 = w2_ref[...]                                        # (50, 100)
        w3d = w3d_ref[...]                                      # (1, 50)

        def chunk(c, carry):
            s = pl.multiple_of(c * lc, lc)
            xc = xT_ref[:, pl.ds(s, lc)].astype(f32)            # (2, lc)

            # Linear(2,100) on the VPU (K=2 is too shallow for the MXU) + LeakyReLU(0.2).
            h1 = w1c0 * xc[0:1, :] + w1c1 * xc[1:2, :] + b1b    # (100, lc)
            h1 = jnp.where(h1 >= 0.0, h1, 0.2 * h1)

            # Linear(100,50) on the MXU + Dropout(identity in eval) + LeakyReLU(0.2).
            # TODO(synk): training-mode stochastic dropout (pltpu.prng_*) is not emitted.
            h2 = jnp.dot(w2, h1, preferred_element_type=f32) + b2b   # (50, lc)
            h2 = jnp.where(h2 >= 0.0, h2, 0.2 * h2)

            # Linear(50,2) + 2-class softmax folded into one logit-difference row.
            d = jnp.dot(w3d, h2, preferred_element_type=f32) + b3db  # (1, lc)
            p0 = 1.0 / (1.0 + jnp.exp(d))  # exact divide keeps 1e-4 accuracy;
                                           # pl.reciprocal(approx=True) is an option
                                           # but the kernel is mem-bound anyway.

            # Single (2, lc) store instead of two single-sublane masked stores.
            out = jnp.concatenate([p0, 1.0 - p0], axis=0)       # (2, lc)
            o_ref[:, pl.ds(s, lc)] = out.astype(o_ref.dtype)
            return carry

        jax.lax.fori_loop(0, n_chunks, chunk, 0, unroll=True)

    return kernel


# ---------------------------------------------------------------------------
# Feature-major entry point: xT is (2, N); returns (2, N) softmax probs.
# Prefer this for large N -- no wrapper-side transpose HBM passes.
# ---------------------------------------------------------------------------
def circlenet_forward_t(xT, params, *, tb=4096, lane_chunk=256,
                        vmem_limit_bytes=32 * 1024 * 1024):
    fin, n = xT.shape
    assert fin == 2
    assert lane_chunk % 128 == 0, "lane chunk must be a multiple of 128 (lane width)"
    assert tb % lane_chunk == 0, "batch tile must be a multiple of the lane chunk"

    w1, b1 = params["w1"], params["b1"]
    w2, b2 = params["w2"], params["b2"]
    w3, b3 = params["w3"], params["b3"]
    # Layer-3 + 2-class softmax fold: only the logit difference matters.
    w3d = w3[1:2, :] - w3[0:1, :]            # (1, 50)
    b3d = b3[1:2, :] - b3[0:1, :]            # (1, 1)

    lc = lane_chunk
    # Tile choice: as large as possible (amortize per-grid-step overhead) but
    # capped so the grid keeps >=2 steps when N allows it, letting
    # ("parallel",) shard the batch across v7x's two TensorCores.
    tb_eff = min(tb, max(lc, pl.cdiv(n, 2 * lc) * lc))
    n_pad = pl.cdiv(n, tb_eff) * tb_eff
    if n_pad != n:
        xT = jnp.pad(xT, ((0, 0), (0, n_pad - n)))   # padded cols computed, then sliced off
    grid = (n_pad // tb_eff,)
    n_chunks = tb_eff // lc

    kernel = _make_kernel(lc, n_chunks)

    # x/out tiled along the batch (lane) axis; all (tiny) weights are passed as
    # full blocks (block_shape == full array dims -> (8,128) rule satisfied)
    # and stay VMEM-resident for every grid step.
    in_specs = [
        pl.BlockSpec((2, tb_eff), lambda i: (0, i)),
        pl.BlockSpec(w1.shape, lambda i: (0, 0)),
        pl.BlockSpec(b1.shape, lambda i: (0, 0)),
        pl.BlockSpec(w2.shape, lambda i: (0, 0)),
        pl.BlockSpec(b2.shape, lambda i: (0, 0)),
        pl.BlockSpec(w3d.shape, lambda i: (0, 0)),
        pl.BlockSpec(b3d.shape, lambda i: (0, 0)),
    ]
    out_spec = pl.BlockSpec((2, tb_eff), lambda i: (0, i))

    outT = pl.pallas_call(
        kernel,
        out_shape=jax.ShapeDtypeStruct((2, n_pad), xT.dtype),
        grid_spec=pltpu.PrefetchScalarGridSpec(
            num_scalar_prefetch=0,
            grid=grid,
            in_specs=in_specs,
            out_specs=out_spec,
        ),
        compiler_params=pltpu.CompilerParams(
            dimension_semantics=("parallel",),
            # Explicit budget: double-buffered (2, tb) in/out tiles + tiny weights
            # use well under 32 MiB even on v7x (64 MiB physical, 32 MiB scoped).
            vmem_limit_bytes=vmem_limit_bytes,
        ),
    )(xT, w1, b1, w2, b2, w3d, b3d)

    return outT[:, :n]


def circlenet_forward(x, params, *, tb=4096, lane_chunk=256,
                      vmem_limit_bytes=32 * 1024 * 1024):
    """PyTorch-layout entry point: x (N, 2) -> softmax probs (N, 2), same dtype.

    NOTE: x.T / out.T are full extra HBM passes in XLA at large N; prefer
    circlenet_forward_t (feature-major (2, N) I/O) when the caller can
    produce/consume that layout.
    """
    n, fin = x.shape
    assert fin == 2
    outT = circlenet_forward_t(x.T, params, tb=tb, lane_chunk=lane_chunk,
                               vmem_limit_bytes=vmem_limit_bytes)
    return outT.T


def init_params(key):
    """Deterministic init; PyTorch nn.Linear layout: W (out, in), b (out, 1)."""
    ks = jax.random.split(key, 6)

    def lin(kw, kb, fan_in, fan_out):
        bound = 1.0 / jnp.sqrt(fan_in)
        w = jax.random.uniform(kw, (fan_out, fan_in), jnp.float32,
                               minval=-bound, maxval=bound)
        b = jax.random.uniform(kb, (fan_out, 1), jnp.float32,
                               minval=-bound, maxval=bound)
        return w, b

    w1, b1 = lin(ks[0], ks[1], 2, 100)
    w2, b2 = lin(ks[2], ks[3], 100, 50)
    w3, b3 = lin(ks[4], ks[5], 50, 2)
    return {"w1": w1, "b1": b1, "w2": w2, "b2": b2, "w3": w3, "b3": b3}


def reference_forward(x, p):
    """Pure-JAX reference (PyTorch semantics, dropout in eval = identity)."""
    x = x.astype(jnp.float32)

    def lrelu(v):
        return jnp.where(v >= 0.0, v, 0.2 * v)

    h1 = lrelu(x @ p["w1"].T + p["b1"].T)
    h2 = lrelu(h1 @ p["w2"].T + p["b2"].T)
    logits = h2 @ p["w3"].T + p["b3"].T
    return jax.nn.softmax(logits, axis=1)


if __name__ == "__main__":
    key = jax.random.PRNGKey(0)
    kx1, kx2, kp = jax.random.split(key, 3)
    params = init_params(kp)

    # 1) Small batch, not tile-aligned (padding path, single grid step, 1 chunk).
    x_small = jax.random.normal(kx1, (200, 2), dtype=jnp.float32)
    out_small = jax.block_until_ready(circlenet_forward(x_small, params))
    ref_small = reference_forward(x_small, params)
    assert out_small.shape == (200, 2)
    assert jnp.allclose(out_small, ref_small, atol=1e-4, rtol=1e-4), \
        "small-batch mismatch vs reference"
    assert jnp.allclose(jnp.sum(out_small, axis=1), 1.0, atol=1e-5), \
        "small-batch softmax rows != 1"

    # 2) Multi-step grid at defaults: N=4096 -> tb_eff=2048, 2 grid steps x 8 chunks.
    x_big = jax.random.normal(kx2, (4096, 2), dtype=jnp.float32)
    out_big = jax.block_until_ready(circlenet_forward(x_big, params))
    ref_big = reference_forward(x_big, params)
    assert out_big.shape == (4096, 2)
    assert jnp.allclose(out_big, ref_big, atol=1e-4, rtol=1e-4), \
        "multi-tile mismatch vs reference"
    assert jnp.allclose(jnp.sum(out_big, axis=1), 1.0, atol=1e-5), \
        "multi-tile softmax rows != 1"

    # 3) Feature-major API (no wrapper transposes) + bf16 I/O path.
    xT_bf16 = x_big.T.astype(jnp.bfloat16)
    outT_bf16 = jax.block_until_ready(circlenet_forward_t(xT_bf16, params))
    assert outT_bf16.shape == (2, 4096) and outT_bf16.dtype == jnp.bfloat16
    ref_bf16 = reference_forward(x_big.astype(jnp.bfloat16), params)
    assert jnp.allclose(outT_bf16.astype(jnp.float32).T, ref_bf16,
                        atol=1.5e-2, rtol=1.5e-2), "bf16 mismatch vs reference"

    # 4) v5e-friendly settings: 128-lane chunks.
    out_v5e = jax.block_until_ready(
        circlenet_forward(x_big, params, lane_chunk=128))
    assert jnp.allclose(out_v5e, ref_big, atol=1e-4, rtol=1e-4), \
        "128-lane-chunk mismatch vs reference"

    print("KERNEL_OK")
</pallas_src>

<mosaic_0001>
module attributes {stable_mosaic.version = 11 : i64} {
  func.func @kernel(%arg0: i32, %arg1: memref<2x256xf32, #tpu.memory_space<vmem>>, %arg2: memref<100x2xf32, #tpu.memory_space<vmem>>, %arg3: memref<100x1xf32, #tpu.memory_space<vmem>>, %arg4: memref<50x100xf32, #tpu.memory_space<vmem>>, %arg5: memref<50x1xf32, #tpu.memory_space<vmem>>, %arg6: memref<1x50xf32, #tpu.memory_space<vmem>>, %arg7: memref<1x1xf32, #tpu.memory_space<vmem>>, %arg8: memref<2x256xf32, #tpu.memory_space<vmem>>) attributes {dimension_semantics = [#tpu.dimension_semantics<parallel>], iteration_bounds = array<i64: 1>, scalar_prefetch = 0 : i64, scratch_operands = 0 : i64, tpu.core_type = #tpu.core_type<tc>, window_params = [{transform_indices = @transform_0, window_bounds = array<i64: 2, 256>}, {pipeline_mode = #tpu.pipeline_mode<synchronous>, transform_indices = @transform_1, window_bounds = array<i64: 100, 2>}, {pipeline_mode = #tpu.pipeline_mode<synchronous>, transform_indices = @transform_2, window_bounds = array<i64: 100, 1>}, {pipeline_mode = #tpu.pipeline_mode<synchronous>, transform_indices = @transform_3, window_bounds = array<i64: 50, 100>}, {pipeline_mode = #tpu.pipeline_mode<synchronous>, transform_indices = @transform_4, window_bounds = array<i64: 50, 1>}, {pipeline_mode = #tpu.pipeline_mode<synchronous>, transform_indices = @transform_5, window_bounds = array<i64: 1, 50>}, {pipeline_mode = #tpu.pipeline_mode<synchronous>, transform_indices = @transform_6, window_bounds = array<i64: 1, 1>}, {transform_indices = @transform_7, window_bounds = array<i64: 2, 256>}]} {
    %c0 = arith.constant 0 : index
    %c0_0 = arith.constant 0 : index
    %0 = vector.load %arg2[%c0, %c0_0] : memref<100x2xf32, #tpu.memory_space<vmem>>, vector<100x1xf32>
    %1 = vector.shape_cast %0 : vector<100x1xf32> to vector<100x1xf32>
    %2 = vector.broadcast %1 : vector<100x1xf32> to vector<100x256xf32>
    %c0_1 = arith.constant 0 : index
    %c1 = arith.constant 1 : index
    %3 = vector.load %arg2[%c0_1, %c1] : memref<100x2xf32, #tpu.memory_space<vmem>>, vector<100x1xf32>
    %4 = vector.shape_cast %3 : vector<100x1xf32> to vector<100x1xf32>
    %5 = vector.broadcast %4 : vector<100x1xf32> to vector<100x256xf32>
    %c0_2 = arith.constant 0 : index
    %c0_3 = arith.constant 0 : index
    %6 = vector.load %arg3[%c0_2, %c0_3] : memref<100x1xf32, #tpu.memory_space<vmem>>, vector<100x1xf32>
    %7 = vector.shape_cast %6 : vector<100x1xf32> to vector<100x1xf32>
    %8 = vector.broadcast %7 : vector<100x1xf32> to vector<100x256xf32>
    %c0_4 = arith.constant 0 : index
    %c0_5 = arith.constant 0 : index
    %9 = vector.load %arg5[%c0_4, %c0_5] : memref<50x1xf32, #tpu.memory_space<vmem>>, vector<50x1xf32>
    %10 = vector.shape_cast %9 : vector<50x1xf32> to vector<50x1xf32>
    %11 = vector.broadcast %10 : vector<50x1xf32> to vector<50x256xf32>
    %c0_6 = arith.constant 0 : index
    %c0_7 = arith.constant 0 : index
    %12 = vector.load %arg7[%c0_6, %c0_7] : memref<1x1xf32, #tpu.memory_space<vmem>>, vector<1x1xf32>
    %13 = vector.shape_cast %12 : vector<1x1xf32> to vector<1x1xf32>
    %14 = vector.broadcast %13 : vector<1x1xf32> to vector<1x256xf32>
    %c0_8 = arith.constant 0 : index
    %c0_9 = arith.constant 0 : index
    %15 = vector.load %arg4[%c0_8, %c0_9] : memref<50x100xf32, #tpu.memory_space<vmem>>, vector<50x100xf32>
    %c0_10 = arith.constant 0 : index
    %c0_11 = arith.constant 0 : index
    %16 = vector.load %arg6[%c0_10, %c0_11] : memref<1x50xf32, #tpu.memory_space<vmem>>, vector<1x50xf32>
    %c0_i32 = arith.constant 0 : i32
    %c256_i32 = arith.constant 256 : i32
    %17 = arith.muli %c0_i32, %c256_i32 : i32
    %18 = tpu.assume_multiple %17, 256 : i32
    %c0_12 = arith.constant 0 : index
    %19 = arith.index_cast %18 : i32 to index
    %20 = vector.load %arg1[%c0_12, %19] : memref<2x256xf32, #tpu.memory_space<vmem>>, vector<2x256xf32>
    %21 = vector.extract_strided_slice %20 {offsets = [0, 0], sizes = [1, 256], strides = [1, 1]} : vector<2x256xf32> to vector<1x256xf32>
    %22 = vector.broadcast %21 : vector<1x256xf32> to vector<100x256xf32>
    %23 = arith.mulf %2, %22 : vector<100x256xf32>
    %24 = vector.extract_strided_slice %20 {offsets = [1, 0], sizes = [1, 256], strides = [1, 1]} : vector<2x256xf32> to vector<1x256xf32>
    %25 = vector.broadcast %24 : vector<1x256xf32> to vector<100x256xf32>
    %26 = arith.mulf %5, %25 : vector<100x256xf32>
    %27 = arith.addf %23, %26 : vector<100x256xf32>
    %28 = arith.addf %27, %8 : vector<100x256xf32>
    %cst = arith.constant 0.000000e+00 : f32
    %29 = vector.broadcast %cst : f32 to vector<100x256xf32>
    %30 = arith.cmpf oge, %28, %29 : vector<100x256xf32>
    %cst_13 = arith.constant 2.000000e-01 : f32
    %31 = vector.broadcast %cst_13 : f32 to vector<100x256xf32>
    %32 = arith.mulf %31, %28 : vector<100x256xf32>
    %33 = arith.select %30, %28, %32 : vector<100x256xi1>, vector<100x256xf32>
    %cst_14 = arith.constant dense<0.000000e+00> : vector<50x256xf32>
    %34 = tpu.matmul %15, %33, %cst_14 {dimension_numbers = #tpu.dot_dimension_numbers<[1], [0], [0], [1], [0, 0, 1, 1], [], []>} : vector<50x100xf32>, vector<100x256xf32>, vector<50x256xf32> -> vector<50x256xf32>
    %35 = arith.addf %34, %11 : vector<50x256xf32>
    %cst_15 = arith.constant 0.000000e+00 : f32
    %36 = vector.broadcast %cst_15 : f32 to vector<50x256xf32>
    %37 = arith.cmpf oge, %35, %36 : vector<50x256xf32>
    %cst_16 = arith.constant 2.000000e-01 : f32
    %38 = vector.broadcast %cst_16 : f32 to vector<50x256xf32>
    %39 = arith.mulf %38, %35 : vector<50x256xf32>
    %40 = arith.select %37, %35, %39 : vector<50x256xi1>, vector<50x256xf32>
    %cst_17 = arith.constant dense<0.000000e+00> : vector<1x256xf32>
    %41 = tpu.matmul %16, %40, %cst_17 {dimension_numbers = #tpu.dot_dimension_numbers<[1], [0], [0], [1], [0, 0, 1, 1], [], []>} : vector<1x50xf32>, vector<50x256xf32>, vector<1x256xf32> -> vector<1x256xf32>
    %42 = arith.addf %41, %14 : vector<1x256xf32>
    %43 = math.exp %42 : vector<1x256xf32>
    %cst_18 = arith.constant 1.000000e+00 : f32
    %44 = vector.broadcast %cst_18 : f32 to vector<1x256xf32>
    %45 = arith.addf %44, %43 : vector<1x256xf32>
    %cst_19 = arith.constant 1.000000e+00 : f32
    %46 = vector.broadcast %cst_19 : f32 to vector<1x256xf32>
    %47 = arith.divf %46, %45 : vector<1x256xf32>
    %cst_20 = arith.constant 1.000000e+00 : f32
    %48 = vector.broadcast %cst_20 : f32 to vector<1x256xf32>
    %49 = arith.subf %48, %47 : vector<1x256xf32>
    %50 = tpu.concatenate %47, %49 in 0 : vector<1x256xf32>, vector<1x256xf32> -> vector<2x256xf32>
    %c0_21 = arith.constant 0 : index
    %51 = arith.index_cast %18 : i32 to index
    %52 = vector.load %arg8[%c0_21, %51] : memref<2x256xf32, #tpu.memory_space<vmem>>, vector<2x256xf32>
    tpu.vector_store %arg8[%c0_21, %51], %50 {strides = array<i32>} : memref<2x256xf32, #tpu.memory_space<vmem>>, vector<2x256xf32>,
    %c1_i32 = arith.constant 1 : i32
    return
  }
  func.func @transform_0(%arg0: i32) -> (i32, i32) {
    %c0_i32 = arith.constant 0 : i32
    %c0_i32_0 = arith.constant 0 : i32
    return %c0_i32, %arg0 : i32, i32
  }
  func.func @transform_1(%arg0: i32) -> (i32, i32) {
    %c0_i32 = arith.constant 0 : i32
    %c0_i32_0 = arith.constant 0 : i32
    %c0_i32_1 = arith.constant 0 : i32
    return %c0_i32, %c0_i32_0 : i32, i32
  }
  func.func @transform_2(%arg0: i32) -> (i32, i32) {
    %c0_i32 = arith.constant 0 : i32
    %c0_i32_0 = arith.constant 0 : i32
    %c0_i32_1 = arith.constant 0 : i32
    return %c0_i32, %c0_i32_0 : i32, i32
  }
  func.func @transform_3(%arg0: i32) -> (i32, i32) {
    %c0_i32 = arith.constant 0 : i32
    %c0_i32_0 = arith.constant 0 : i32
    %c0_i32_1 = arith.constant 0 : i32
    return %c0_i32, %c0_i32_0 : i32, i32
  }
  func.func @transform_4(%arg0: i32) -> (i32, i32) {
    %c0_i32 = arith.constant 0 : i32
    %c0_i32_0 = arith.constant 0 : i32
    %c0_i32_1 = arith.constant 0 : i32
    return %c0_i32, %c0_i32_0 : i32, i32
  }
  func.func @transform_5(%arg0: i32) -> (i32, i32) {
    %c0_i32 = arith.constant 0 : i32
    %c0_i32_0 = arith.constant 0 : i32
    %c0_i32_1 = arith.constant 0 : i32
    return %c0_i32, %c0_i32_0 : i32, i32
  }
  func.func @transform_6(%arg0: i32) -> (i32, i32) {
    %c0_i32 = arith.constant 0 : i32
    %c0_i32_0 = arith.constant 0 : i32
    %c0_i32_1 = arith.constant 0 : i32
    return %c0_i32, %c0_i32_0 : i32, i32
  }
  func.func @transform_7(%arg0: i32) -> (i32, i32) {
    %c0_i32 = arith.constant 0 : i32
    %c0_i32_0 = arith.constant 0 : i32
    return %c0_i32, %arg0 : i32, i32
  }
}

</mosaic_0001>

<llo_original>
// kernel: tpu_custom_call.1
$region0: #{tpu_custom_call.1}
  #allocation0 [shape = 'u32[]', space=smem, size = 0x4, offset = 0x4, fixed_abs, tag = 'smem constant byte address 0x4 - core index']
  #allocation1 [shape = 'u32[144,128]{1,0:T(1,128)}', space=vmem, size = 0x12000, scoped, tag = 'internal scratch']
  #allocation2 [shape = 'f32[1,1]{1,0:T(1,128)S(1)}', space=vmem, size = 0x200, scoped, tag = 'scoped memory for tpu_custom_call.1']
  %s0 = inlined_call_operand.vmem [shape: f32[2,256], index: 0, kind: input, shape index: {}]
  %s1 = inlined_call_operand.vmem [shape: f32[100,2], index: 1, kind: input, shape index: {}]
  %s2 = inlined_call_operand.vmem [shape: f32[100,1], index: 2, kind: input, shape index: {}]
  %s3 = inlined_call_operand.vmem [shape: f32[50,100], index: 3, kind: input, shape index: {}]
  %s4 = inlined_call_operand.vmem [shape: f32[50,1], index: 4, kind: input, shape index: {}]
  %s5 = inlined_call_operand.vmem [shape: f32[1,50], index: 5, kind: input, shape index: {}]
  %s6 = inlined_call_operand.<no memory space> [shape: f32[1,1], index: 6, kind: input, shape index: {}]
  %s7 = inlined_call_operand.hbm [shape: f32[2,256], index: 7, kind: output, shape index: {}]
  %s8 = sld [smem:[#allocation0]]
  $region38: #{tpu_custom_call.1} parent=0
    _
  %s10 = ssub.s32 1, %s8
  %s11 = scalar_select 0, %s10, %s8
  %v12 = vstv %s6
  %13 = vst [vmem:[#allocation2] sm:$0x1] %v12
  $region1: #{tpu_custom_call.1} parent=0
    #allocation3 [shape = 'u8[2048]{0}', space=vmem, size = 0x800, scoped, tag = 'output window, operand 0, single buffered']
    #allocation4 [shape = 's32[1]{0}', space=sflag, size = 0x4, scoped, tag = 'scoped memory for tpu_custom_call.1']
    %14 = vsyncpa [#allocation4], 0
    // Predicated region
    $region2: #{tpu_custom_call.1} parent=1 // pred_check
      _
    $region3: #{tpu_custom_call.1} parent=1 // pred_check_branch
      %16 = sbr.rel (0) target = $region5
    $region4: #{tpu_custom_call.1} parent=1 // pred_region
      _
    $region5: #{tpu_custom_call.1} parent=1 // pred_fallthru
      _
    // Predicated region
    $region6: #{tpu_custom_call.1} parent=1 // pred_check
      _
    $region7: #{tpu_custom_call.1} parent=1 // pred_check_branch
      %18 = sbr.rel (0) target = $region9
    $region8: #{tpu_custom_call.1} parent=1 // pred_region
      _
    $region9: #{tpu_custom_call.1} parent=1 // pred_fallthru
      _
    // Predicated region
    $region10: #{tpu_custom_call.1} parent=1 // pred_check
      _
    $region11: #{tpu_custom_call.1} parent=1 // pred_check_branch
      %20 = sbr.rel (0) target = $region13
    $region12: #{tpu_custom_call.1} parent=1 // pred_region
      _
    $region13: #{tpu_custom_call.1} parent=1 // pred_fallthru
      _
    // Predicated region
    $region14: #{tpu_custom_call.1} parent=1 // pred_check
      _
    $region15: #{tpu_custom_call.1} parent=1 // pred_check_branch
      %22 = sbr.rel (0) target = $region17
    $region16: #{tpu_custom_call.1} parent=1 // pred_region
      _
    $region17: #{tpu_custom_call.1} parent=1 // pred_fallthru
      _
    // Predicated region
    $region18: #{tpu_custom_call.1} parent=1 // pred_check
      _
    $region19: #{tpu_custom_call.1} parent=1 // pred_check_branch
      %24 = sbr.rel (0) target = $region21
    $region20: #{tpu_custom_call.1} parent=1 // pred_region
      _
    $region21: #{tpu_custom_call.1} parent=1 // pred_fallthru
      _
    // Predicated region
    $region22: #{tpu_custom_call.1} parent=1 // pred_check
      _
    $region23: #{tpu_custom_call.1} parent=1 // pred_check_branch
      %26 = sbr.rel (0) target = $region25
    $region24: #{tpu_custom_call.1} parent=1 // pred_region
      _
    $region25: #{tpu_custom_call.1} parent=1 // pred_fallthru
      _
    // Predicated region
    $region26: #{tpu_custom_call.1} parent=1 // pred_check
      _
    $region27: #{tpu_custom_call.1} parent=1 // pred_check_branch
      %28 = sbr.rel (0) target = $region29
    $region28: #{tpu_custom_call.1} parent=1 // pred_region
      _
    $region29: #{tpu_custom_call.1} parent=1 // pred_fallthru
      _
    %v29 = vld [vmem:[%s1] sm:$0xff]
    %v30 = vld [vmem:[%s1 + $0x8] sm:$0xff]
    %v31 = vld [vmem:[%s1 + $0x10] sm:$0xff]
    %v32 = vld [vmem:[%s1 + $0x18] sm:$0xff]
    %v33 = vld [vmem:[%s1 + $0x20] sm:$0xff]
    %v34 = vld [vmem:[%s1 + $0x28] sm:$0xff]
    %v35 = vld [vmem:[%s1 + $0x30] sm:$0xff]
    %v36 = vld [vmem:[%s1 + $0x38] sm:$0xff]
    %v37 = vld [vmem:[%s1 + $0x40] sm:$0xff]
    %v38 = vld [vmem:[%s1 + $0x48] sm:$0xff]
    %v39 = vld [vmem:[%s1 + $0x50] sm:$0xff]
    %v40 = vld [vmem:[%s1 + $0x58] sm:$0xff]
    %v41 = vld [vmem:[%s1 + $0x60] sm:$0xf]
    %43 = vset.pattern.permute.xlu0 0
    %44 = vperm.xlu0 %43, %v29
    %v45 = vpop.permute.xlu0 %44
    %48 = vset.pattern.permute.xlu0 0
    %49 = vperm.xlu0 %48, %v30
    %v50 = vpop.permute.xlu0 %49
    %53 = vset.pattern.permute.xlu0 0
    %54 = vperm.xlu0 %53, %v31
    %v55 = vpop.permute.xlu0 %54
    %58 = vset.pattern.permute.xlu0 0
    %59 = vperm.xlu0 %58, %v32
    %v60 = vpop.permute.xlu0 %59
    %63 = vset.pattern.permute.xlu0 0
    %64 = vperm.xlu0 %63, %v33
    %v65 = vpop.permute.xlu0 %64
    %68 = vset.pattern.permute.xlu0 0
    %69 = vperm.xlu0 %68, %v34
    %v70 = vpop.permute.xlu0 %69
    %73 = vset.pattern.permute.xlu0 0
    %74 = vperm.xlu0 %73, %v35
    %v75 = vpop.permute.xlu0 %74
    %78 = vset.pattern.permute.xlu0 0
    %79 = vperm.xlu0 %78, %v36
    %v80 = vpop.permute.xlu0 %79
    %83 = vset.pattern.permute.xlu0 0
    %84 = vperm.xlu0 %83, %v37
    %v85 = vpop.permute.xlu0 %84
    %88 = vset.pattern.permute.xlu0 0
    %89 = vperm.xlu0 %88, %v38
    %v90 = vpop.permute.xlu0 %89
    %93 = vset.pattern.permute.xlu0 0
    %94 = vperm.xlu0 %93, %v39
    %v95 = vpop.permute.xlu0 %94
    %98 = vset.pattern.permute.xlu0 0
    %99 = vperm.xlu0 %98, %v40
    %v100 = vpop.permute.xlu0 %99
    %103 = vset.pattern.permute.xlu0 0
    %104 = vperm.xlu0 %103, %v41
    %v105 = vpop.permute.xlu0 %104
    %107 = vset.pattern.permute.xlu0 1
    %108 = vperm.xlu0 %107, %v29
    %v109 = vpop.permute.xlu0 %108
    %111 = vset.pattern.permute.xlu0 1
    %112 = vperm.xlu0 %111, %v30
    %v113 = vpop.permute.xlu0 %112
    %115 = vset.pattern.permute.xlu0 1
    %116 = vperm.xlu0 %115, %v31
    %v117 = vpop.permute.xlu0 %116
    %119 = vset.pattern.permute.xlu0 1
    %120 = vperm.xlu0 %119, %v32
    %v121 = vpop.permute.xlu0 %120
    %123 = vset.pattern.permute.xlu0 1
    %124 = vperm.xlu0 %123, %v33
    %v125 = vpop.permute.xlu0 %124
    %127 = vset.pattern.permute.xlu0 1
    %128 = vperm.xlu0 %127, %v34
    %v129 = vpop.permute.xlu0 %128
    %131 = vset.pattern.permute.xlu0 1
    %132 = vperm.xlu0 %131, %v35
    %v133 = vpop.permute.xlu0 %132
    %135 = vset.pattern.permute.xlu0 1
    %136 = vperm.xlu0 %135, %v36
    %v137 = vpop.permute.xlu0 %136
    %139 = vset.pattern.permute.xlu0 1
    %140 = vperm.xlu0 %139, %v37
    %v141 = vpop.permute.xlu0 %140
    %143 = vset.pattern.permute.xlu0 1
    %144 = vperm.xlu0 %143, %v38
    %v145 = vpop.permute.xlu0 %144
    %147 = vset.pattern.permute.xlu0 1
    %148 = vperm.xlu0 %147, %v39
    %v149 = vpop.permute.xlu0 %148
    %151 = vset.pattern.permute.xlu0 1
    %152 = vperm.xlu0 %151, %v40
    %v153 = vpop.permute.xlu0 %152
    %155 = vset.pattern.permute.xlu0 1
    %156 = vperm.xlu0 %155, %v41
    %v157 = vpop.permute.xlu0 %156
    %v159 = vld [vmem:[%s2] sm:$0xff]
    %v160 = vld [vmem:[%s2 + $0x8] sm:$0xff]
    %v161 = vld [vmem:[%s2 + $0x10] sm:$0xff]
    %v162 = vld [vmem:[%s2 + $0x18] sm:$0xff]
    %v163 = vld [vmem:[%s2 + $0x20] sm:$0xff]
    %v164 = vld [vmem:[%s2 + $0x28] sm:$0xff]
    %v165 = vld [vmem:[%s2 + $0x30] sm:$0xff]
    %v166 = vld [vmem:[%s2 + $0x38] sm:$0xff]
    %v167 = vld [vmem:[%s2 + $0x40] sm:$0xff]
    %v168 = vld [vmem:[%s2 + $0x48] sm:$0xff]
    %v169 = vld [vmem:[%s2 + $0x50] sm:$0xff]
    %v170 = vld [vmem:[%s2 + $0x58] sm:$0xff]
    %v171 = vld [vmem:[%s2 + $0x60] sm:$0xf]
    %173 = vset.pattern.permute.xlu0 0
    %174 = vperm.xlu0 %173, %v159
    %v175 = vpop.permute.xlu0 %174
    %178 = vset.pattern.permute.xlu0 0
    %179 = vperm.xlu0 %178, %v160
    %v180 = vpop.permute.xlu0 %179
    %183 = vset.pattern.permute.xlu0 0
    %184 = vperm.xlu0 %183, %v161
    %v185 = vpop.permute.xlu0 %184
    %188 = vset.pattern.permute.xlu0 0
    %189 = vperm.xlu0 %188, %v162
    %v190 = vpop.permute.xlu0 %189
    %193 = vset.pattern.permute.xlu0 0
    %194 = vperm.xlu0 %193, %v163
    %v195 = vpop.permute.xlu0 %194
    %198 = vset.pattern.permute.xlu0 0
    %199 = vperm.xlu0 %198, %v164
    %v200 = vpop.permute.xlu0 %199
    %203 = vset.pattern.permute.xlu0 0
    %204 = vperm.xlu0 %203, %v165
    %v205 = vpop.permute.xlu0 %204
    %208 = vset.pattern.permute.xlu0 0
    %209 = vperm.xlu0 %208, %v166
    %v210 = vpop.permute.xlu0 %209
    %213 = vset.pattern.permute.xlu0 0
    %214 = vperm.xlu0 %213, %v167
    %v215 = vpop.permute.xlu0 %214
    %218 = vset.pattern.permute.xlu0 0
    %219 = vperm.xlu0 %218, %v168
    %v220 = vpop.permute.xlu0 %219
    %223 = vset.pattern.permute.xlu0 0
    %224 = vperm.xlu0 %223, %v169
    %v225 = vpop.permute.xlu0 %224
    %228 = vset.pattern.permute.xlu0 0
    %229 = vperm.xlu0 %228, %v170
    %v230 = vpop.permute.xlu0 %229
    %233 = vset.pattern.permute.xlu0 0
    %234 = vperm.xlu0 %233, %v171
    %v235 = vpop.permute.xlu0 %234
    %v237 = vld [vmem:[%s4] sm:$0xff]
    %v238 = vld [vmem:[%s4 + $0x8] sm:$0xff]
    %v239 = vld [vmem:[%s4 + $0x10] sm:$0xff]
    %v240 = vld [vmem:[%s4 + $0x18] sm:$0xff]
    %v241 = vld [vmem:[%s4 + $0x20] sm:$0xff]
    %v242 = vld [vmem:[%s4 + $0x28] sm:$0xff]
    %v243 = vld [vmem:[%s4 + $0x30] sm:$0x3]
    %245 = vset.pattern.permute.xlu0 0
    %246 = vperm.xlu0 %245, %v237
    %v247 = vpop.permute.xlu0 %246
    %250 = vset.pattern.permute.xlu0 0
    %251 = vperm.xlu0 %250, %v238
    %v252 = vpop.permute.xlu0 %251
    %255 = vset.pattern.permute.xlu0 0
    %256 = vperm.xlu0 %255, %v239
    %v257 = vpop.permute.xlu0 %256
    %260 = vset.pattern.permute.xlu0 0
    %261 = vperm.xlu0 %260, %v240
    %v262 = vpop.permute.xlu0 %261
    %265 = vset.pattern.permute.xlu0 0
    %266 = vperm.xlu0 %265, %v241
    %v267 = vpop.permute.xlu0 %266
    %270 = vset.pattern.permute.xlu0 0
    %271 = vperm.xlu0 %270, %v242
    %v272 = vpop.permute.xlu0 %271
    %275 = vset.pattern.permute.xlu0 0
    %276 = vperm.xlu0 %275, %v243
    %v277 = vpop.permute.xlu0 %276
    %v279 = vld [vmem:[#allocation2] sm:$0x1]
    %281 = vset.pattern.permute.xlu0 0
    %282 = vperm.xlu0 %281, %v279
    %v283 = vpop.permute.xlu0 %282
    %v285 = vlaneseq
    %v286 = vshrl.u32 %v285, 7
    %v287 = vsub.s32 0, %v286
    %v288 = vrot.slane %v283, %v287
    %v289 = vld [vmem:[%s3] sm:$0xff]
    %v290 = vld [vmem:[%s3 + $0x8] sm:$0xff]
    %v291 = vld [vmem:[%s3 + $0x10] sm:$0xff]
    %v292 = vld [vmem:[%s3 + $0x18] sm:$0xff]
    %v293 = vld [vmem:[%s3 + $0x20] sm:$0xff]
    %v294 = vld [vmem:[%s3 + $0x28] sm:$0xff]
    %v295 = vld [vmem:[%s3 + $0x30] sm:$0x3]
    %v296 = vld [vmem:[%s5] sm:$0x1]
    %v297 = vld [vmem:[%s0] sm:$0xf]
    %v299 = vlaneseq
    %v300 = vshrl.u32 %v299, 7
    %v301 = vsub.s32 0, %v300
    %v302 = vrot.slane %v297, %v301
    %v303 = vlaneseq
    %v304 = vshrl.u32 %v303, 7
    %v305 = vsub.s32 2, %v304
    %v306 = vrot.slane %v297, %v305
    %v309 = vlaneseq
    %v310 = vshrl.u32 %v309, 7
    %v311 = vsub.s32 0, %v310
    %v312 = vrot.slane %v302, %v311
    %v313 = vlaneseq
    %v314 = vshrl.u32 %v313, 7
    %v315 = vsub.s32 0, %v314
    %v316 = vrot.slane %v306, %v315
    %v317 = vmul.f32 %v45, %v312
    %v318 = vmul.f32 %v45, %v316
    %v319 = vmul.f32 %v50, %v312
    %v320 = vmul.f32 %v50, %v316
    %v321 = vmul.f32 %v55, %v312
    %v322 = vmul.f32 %v55, %v316
    %v323 = vmul.f32 %v60, %v312
    %v324 = vmul.f32 %v60, %v316
    %v325 = vmul.f32 %v65, %v312
    %v326 = vmul.f32 %v65, %v316
    %v327 = vmul.f32 %v70, %v312
    %v328 = vmul.f32 %v70, %v316
    %v329 = vmul.f32 %v75, %v312
    %v330 = vmul.f32 %v75, %v316
    %v331 = vmul.f32 %v80, %v312
    %v332 = vmul.f32 %v80, %v316
    %v333 = vmul.f32 %v85, %v312
    %v334 = vmul.f32 %v85, %v316
    %v335 = vmul.f32 %v90, %v312
    %v336 = vmul.f32 %v90, %v316
    %v337 = vmul.f32 %v95, %v312
    %v338 = vmul.f32 %v95, %v316
    %v339 = vmul.f32 %v100, %v312
    %v340 = vmul.f32 %v100, %v316
    %v341 = vmul.f32 %v105, %v312
    %v342 = vmul.f32 %v105, %v316
    %v343 = vlaneseq
    %v344 = vshrl.u32 %v343, 7
    %v345 = vsub.s32 1, %v344
    %v346 = vrot.slane %v297, %v345
    %v347 = vlaneseq
    %v348 = vshrl.u32 %v347, 7
    %v349 = vsub.s32 3, %v348
    %v350 = vrot.slane %v297, %v349
    %v353 = vlaneseq
    %v354 = vshrl.u32 %v353, 7
    %v355 = vsub.s32 1, %v354
    %v356 = vrot.slane %v346, %v355
    %v357 = vlaneseq
    %v358 = vshrl.u32 %v357, 7
    %v359 = vsub.s32 1, %v358
    %v360 = vrot.slane %v350, %v359
    %v361 = vmul.f32 %v109, %v356
    %v362 = vmul.f32 %v109, %v360
    %v363 = vmul.f32 %v113, %v356
    %v364 = vmul.f32 %v113, %v360
    %v365 = vmul.f32 %v117, %v356
    %v366 = vmul.f32 %v117, %v360
    %v367 = vmul.f32 %v121, %v356
    %v368 = vmul.f32 %v121, %v360
    %v369 = vmul.f32 %v125, %v356
    %v370 = vmul.f32 %v125, %v360
    %v371 = vmul.f32 %v129, %v356
    %v372 = vmul.f32 %v129, %v360
    %v373 = vmul.f32 %v133, %v356
    %v374 = vmul.f32 %v133, %v360
    %v375 = vmul.f32 %v137, %v356
    %v376 = vmul.f32 %v137, %v360
    %v377 = vmul.f32 %v141, %v356
    %v378 = vmul.f32 %v141, %v360
    %v379 = vmul.f32 %v145, %v356
    %v380 = vmul.f32 %v145, %v360
    %v381 = vmul.f32 %v149, %v356
    %v382 = vmul.f32 %v149, %v360
    %v383 = vmul.f32 %v153, %v356
    %v384 = vmul.f32 %v153, %v360
    %v385 = vmul.f32 %v157, %v356
    %v386 = vmul.f32 %v157, %v360
    %v387 = vadd.f32 %v317, %v361
    %v388 = vadd.f32 %v318, %v362
    %v389 = vadd.f32 %v319, %v363
    %v390 = vadd.f32 %v320, %v364
    %v391 = vadd.f32 %v321, %v365
    %v392 = vadd.f32 %v322, %v366
    %v393 = vadd.f32 %v323, %v367
    %v394 = vadd.f32 %v324, %v368
    %v395 = vadd.f32 %v325, %v369
    %v396 = vadd.f32 %v326, %v370
    %v397 = vadd.f32 %v327, %v371
    %v398 = vadd.f32 %v328, %v372
    %v399 = vadd.f32 %v329, %v373
    %v400 = vadd.f32 %v330, %v374
    %v401 = vadd.f32 %v331, %v375
    %v402 = vadd.f32 %v332, %v376
    %v403 = vadd.f32 %v333, %v377
    %v404 = vadd.f32 %v334, %v378
    %v405 = vadd.f32 %v335, %v379
    %v406 = vadd.f32 %v336, %v380
    %v407 = vadd.f32 %v337, %v381
    %v408 = vadd.f32 %v338, %v382
    %v409 = vadd.f32 %v339, %v383
    %v410 = vadd.f32 %v340, %v384
    %v411 = vadd.f32 %v341, %v385
    %v412 = vadd.f32 %v342, %v386
    %v413 = vadd.f32 %v387, %v175
    %v414 = vadd.f32 %v388, %v175
    %v415 = vadd.f32 %v389, %v180
    %v416 = vadd.f32 %v390, %v180
    %v417 = vadd.f32 %v391, %v185
    %v418 = vadd.f32 %v392, %v185
    %v419 = vadd.f32 %v393, %v190
    %v420 = vadd.f32 %v394, %v190
    %v421 = vadd.f32 %v395, %v195
    %v422 = vadd.f32 %v396, %v195
    %v423 = vadd.f32 %v397, %v200
    %v424 = vadd.f32 %v398, %v200
    %v425 = vadd.f32 %v399, %v205
    %v426 = vadd.f32 %v400, %v205
    %v427 = vadd.f32 %v401, %v210
    %v428 = vadd.f32 %v402, %v210
    %v429 = vadd.f32 %v403, %v215
    %v430 = vadd.f32 %v404, %v215
    %v431 = vadd.f32 %v405, %v220
    %v432 = vadd.f32 %v406, %v220
    %v433 = vadd.f32 %v407, %v225
    %v434 = vadd.f32 %v408, %v225
    %v435 = vadd.f32 %v409, %v230
    %v436 = vadd.f32 %v410, %v230
    %v437 = vadd.f32 %v411, %v235
    %v438 = vadd.f32 %v412, %v235
    %vm439 = vcmp.ge.f32.partialorder %v413, 0.0
    %vm440 = vcmp.ge.f32.partialorder %v414, 0.0
    %vm441 = vcmp.ge.f32.partialorder %v415, 0.0
    %vm442 = vcmp.ge.f32.partialorder %v416, 0.0
    %vm443 = vcmp.ge.f32.partialorder %v417, 0.0
    %vm444 = vcmp.ge.f32.partialorder %v418, 0.0
    %vm445 = vcmp.ge.f32.partialorder %v419, 0.0
    %vm446 = vcmp.ge.f32.partialorder %v420, 0.0
    %vm447 = vcmp.ge.f32.partialorder %v421, 0.0
    %vm448 = vcmp.ge.f32.partialorder %v422, 0.0
    %vm449 = vcmp.ge.f32.partialorder %v423, 0.0
    %vm450 = vcmp.ge.f32.partialorder %v424, 0.0
    %vm451 = vcmp.ge.f32.partialorder %v425, 0.0
    %vm452 = vcmp.ge.f32.partialorder %v426, 0.0
    %vm453 = vcmp.ge.f32.partialorder %v427, 0.0
    %vm454 = vcmp.ge.f32.partialorder %v428, 0.0
    %vm455 = vcmp.ge.f32.partialorder %v429, 0.0
    %vm456 = vcmp.ge.f32.partialorder %v430, 0.0
    %vm457 = vcmp.ge.f32.partialorder %v431, 0.0
    %vm458 = vcmp.ge.f32.partialorder %v432, 0.0
    %vm459 = vcmp.ge.f32.partialorder %v433, 0.0
    %vm460 = vcmp.ge.f32.partialorder %v434, 0.0
    %vm461 = vcmp.ge.f32.partialorder %v435, 0.0
    %vm462 = vcmp.ge.f32.partialorder %v436, 0.0
    %vm463 = vcmp.ge.f32.partialorder %v437, 0.0
    %vm464 = vcmp.ge.f32.partialorder %v438, 0.0
    %v465 = vmul.f32 %v413, 0.2
    %v466 = vmul.f32 %v414, 0.2
    %v467 = vmul.f32 %v415, 0.2
    %v468 = vmul.f32 %v416, 0.2
    %v469 = vmul.f32 %v417, 0.2
    %v470 = vmul.f32 %v418, 0.2
    %v471 = vmul.f32 %v419, 0.2
    %v472 = vmul.f32 %v420, 0.2
    %v473 = vmul.f32 %v421, 0.2
    %v474 = vmul.f32 %v422, 0.2
    %v475 = vmul.f32 %v423, 0.2
    %v476 = vmul.f32 %v424, 0.2
    %v477 = vmul.f32 %v425, 0.2
    %v478 = vmul.f32 %v426, 0.2
    %v479 = vmul.f32 %v427, 0.2
    %v480 = vmul.f32 %v428, 0.2
    %v481 = vmul.f32 %v429, 0.2
    %v482 = vmul.f32 %v430, 0.2
    %v483 = vmul.f32 %v431, 0.2
    %v484 = vmul.f32 %v432, 0.2
    %v485 = vmul.f32 %v433, 0.2
    %v486 = vmul.f32 %v434, 0.2
    %v487 = vmul.f32 %v435, 0.2
    %v488 = vmul.f32 %v436, 0.2
    %v489 = vmul.f32 %v437, 0.2
    %v490 = vmul.f32 %v438, 0.2
    %v491 = vsel %vm439, %v413, %v465
    %v492 = vsel %vm440, %v414, %v466
    %v493 = vsel %vm441, %v415, %v467
    %v494 = vsel %vm442, %v416, %v468
    %v495 = vsel %vm443, %v417, %v469
    %v496 = vsel %vm444, %v418, %v470
    %v497 = vsel %vm445, %v419, %v471
    %v498 = vsel %vm446, %v420, %v472
    %v499 = vsel %vm447, %v421, %v473
    %v500 = vsel %vm448, %v422, %v474
    %v501 = vsel %vm449, %v423, %v475
    %v502 = vsel %vm450, %v424, %v476
    %v503 = vsel %vm451, %v425, %v477
    %v504 = vsel %vm452, %v426, %v478
    %v505 = vsel %vm453, %v427, %v479
    %v506 = vsel %vm454, %v428, %v480
    %v507 = vsel %vm455, %v429, %v481
    %v508 = vsel %vm456, %v430, %v482
    %v509 = vsel %vm457, %v431, %v483
    %v510 = vsel %vm458, %v432, %v484
    %v511 = vsel %vm459, %v433, %v485
    %v512 = vsel %vm460, %v434, %v486
    %v513 = vsel %vm461, %v435, %v487
    %v514 = vsel %vm462, %v436, %v488
    %v515 = vsel %vm463, %v437, %v489
    %v516 = vsel %vm464, %v438, %v490
    %vm517 = vcmask 818176
    %v519 = vsel %vm517, %v289, 0
    %v522 = vsel %vm517, %v290, 0
    %v525 = vsel %vm517, %v291, 0
    %v528 = vsel %vm517, %v292, 0
    %v531 = vsel %vm517, %v293, 0
    %v534 = vsel %vm517, %v294, 0
    %v537 = vsel %vm517, %v295, 0
    %vm539 = vcmask 1043456
    %v541 = vsel %vm539, %v515, 0
    %v544 = vsel %vm539, %v516, 0
    %546 = vmatprep.subr.mxu0 %v492
    %547 = vmatpush1.msra.mxu0 %v491
    %548 = vmatprep.subr.mxu0 %v494
    %549 = vmatpush1.msra.mxu0 %v493
    %550 = vmatprep.subr.mxu0 %v496
    %551 = vmatpush1.msra.mxu0 %v495
    %552 = vmatprep.subr.mxu0 %v498
    %553 = vmatpush1.msra.mxu0 %v497
    %554 = vmatprep.subr.mxu0 %v500
    %555 = vmatpush1.msra.mxu0 %v499
    %556 = vmatprep.subr.mxu0 %v502
    %557 = vmatpush1.msra.mxu0 %v501
    %558 = vmatprep.subr.mxu0 %v504
    %559 = vmatpush1.msra.mxu0 %v503
    %560 = vmatprep.subr.mxu0 %v506
    %561 = vmatpush1.msra.mxu0 %v505
    %562 = vmatprep.subr.mxu0 %v508
    %563 = vmatpush1.msra.mxu0 %v507
    %564 = vmatprep.subr.mxu0 %v510
    %565 = vmatpush1.msra.mxu0 %v509
    %566 = vmatprep.subr.mxu0 %v512
    %567 = vmatpush1.msra.mxu0 %v511
    %568 = vmatprep.subr.mxu0 %v514
    %569 = vmatpush1.msra.mxu0 %v513
    %570 = vmatprep.subr.mxu0 %v544
    %571 = vmatpush1.msra.mxu0 %v541
    %572 = vmatprep.subr.mxu0 0.0
    %573 = vmatpush1.msra.mxu0 0.0
    %574 = vmatprep.subr.mxu0 0.0
    %575 = vmatpush1.msra.mxu0 0.0
    %576 = vmatprep.subr.mxu0 0.0
    %577 = vmatpush1.msra.mxu0 0.0
    %578 = vmatprep.subr.mxu0 0.0
    %579 = vmatpush1.msra.mxu0 0.0
    %580 = vmatprep.subr.mxu0 0.0
    %581 = vmatpush1.msra.mxu0 0.0
    %582 = vmatprep.subr.mxu0 0.0
    %583 = vmatpush1.msra.mxu0 0.0
    %584 = vmatprep.subr.mxu0 0.0
    %585 = vmatpush1.msra.mxu0 0.0
    %586 = vmatprep.subr.mxu0 0.0
    %587 = vmatpush1.msra.mxu0 0.0
    %588 = vmatprep.subr.mxu0 0.0
    %589 = vmatpush1.msra.mxu0 0.0
    %590 = vmatprep.subr.mxu0 0.0
    %591 = vmatpush1.msra.mxu0 0.0
    %592 = vmatprep.subr.mxu0 0.0
    %593 = vmatpush1.msra.mxu0 0.0
    %594 = vmatprep.subr.mxu0 0.0
    %595 = vmatpush1.msra.mxu0 0.0
    %596 = vmatprep.subr.mxu0 0.0
    %597 = vmatpush1.msra.mxu0 0.0
    %598 = vmatprep.subr.mxu0 0.0
    %599 = vmatpush1.msra.mxu0 0.0
    %600 = vmatprep.subr.mxu0 0.0
    %601 = vmatpush1.msra.mxu0 0.0
    %602 = vmatprep.subr.mxu0 0.0
    %603 = vmatpush1.msra.mxu0 0.0
    %604 = vmatprep.subr.mxu0 0.0
    %605 = vmatpush1.msra.mxu0 0.0
    %606 = vmatprep.subr.mxu0 0.0
    %607 = vmatpush1.msra.mxu0 0.0
    %608 = vmatprep.subr.mxu0 0.0
    %609 = vmatpush1.msra.mxu0 0.0
    %610 = vmatprep.mubr.f32.mxu0 0.0
    %611 = vmatmul.mubr.f32.gmra.mrb[0].mxu0 %v519
    %v612 = vpop.f32.mrb[0].mxu0
    %v613 = vadd.f32 %v247, %v612
    %v614 = vpop.f32.mrb[0].mxu0
    %v615 = vadd.f32 %v247, %v614
    %616 = vmatprep.mubr.f32.mxu0 0.0
    %617 = vmatmul.mubr.f32.gmra.mrb[0].mxu0 %v522
    %v618 = vpop.f32.mrb[0].mxu0
    %v619 = vadd.f32 %v252, %v618
    %v620 = vpop.f32.mrb[0].mxu0
    %v621 = vadd.f32 %v252, %v620
    %622 = vmatprep.mubr.f32.mxu0 0.0
    %623 = vmatmul.mubr.f32.gmra.mrb[0].mxu0 %v525
    %v624 = vpop.f32.mrb[0].mxu0
    %v625 = vadd.f32 %v257, %v624
    %v626 = vpop.f32.mrb[0].mxu0
    %v627 = vadd.f32 %v257, %v626
    %628 = vmatprep.mubr.f32.mxu0 0.0
    %629 = vmatmul.mubr.f32.gmra.mrb[0].mxu0 %v528
    %v630 = vpop.f32.mrb[0].mxu0
    %v631 = vadd.f32 %v262, %v630
    %v632 = vpop.f32.mrb[0].mxu0
    %v633 = vadd.f32 %v262, %v632
    %634 = vmatprep.mubr.f32.mxu0 0.0
    %635 = vmatmul.mubr.f32.gmra.mrb[0].mxu0 %v531
    %v636 = vpop.f32.mrb[0].mxu0
    %v637 = vadd.f32 %v267, %v636
    %v638 = vpop.f32.mrb[0].mxu0
    %v639 = vadd.f32 %v267, %v638
    %640 = vmatprep.mubr.f32.mxu0 0.0
    %641 = vmatmul.mubr.f32.gmra.mrb[0].mxu0 %v534
    %v642 = vpop.f32.mrb[0].mxu0
    %v643 = vadd.f32 %v272, %v642
    %v644 = vpop.f32.mrb[0].mxu0
    %v645 = vadd.f32 %v272, %v644
    %646 = vmatprep.mubr.f32.mxu0 0.0
    %647 = vmatmul.mubr.f32.gmra.mrb[0].mxu0 %v537
    %v648 = vpop.f32.mrb[0].mxu0
    %v649 = vadd.f32 %v277, %v648
    %v650 = vpop.f32.mrb[0].mxu0
    %v651 = vadd.f32 %v277, %v650
    %652 = vdwg.mxu0
    %vm653 = vcmp.ge.f32.partialorder %v613, 0.0
    %vm654 = vcmp.ge.f32.partialorder %v615, 0.0
    %vm655 = vcmp.ge.f32.partialorder %v619, 0.0
    %vm656 = vcmp.ge.f32.partialorder %v621, 0.0
    %vm657 = vcmp.ge.f32.partialorder %v625, 0.0
    %vm658 = vcmp.ge.f32.partialorder %v627, 0.0
    %vm659 = vcmp.ge.f32.partialorder %v631, 0.0
    %vm660 = vcmp.ge.f32.partialorder %v633, 0.0
    %vm661 = vcmp.ge.f32.partialorder %v637, 0.0
    %vm662 = vcmp.ge.f32.partialorder %v639, 0.0
    %vm663 = vcmp.ge.f32.partialorder %v643, 0.0
    %vm664 = vcmp.ge.f32.partialorder %v645, 0.0
    %vm665 = vcmp.ge.f32.partialorder %v649, 0.0
    %vm666 = vcmp.ge.f32.partialorder %v651, 0.0
    %v667 = vmul.f32 %v613, 0.2
    %v668 = vmul.f32 %v615, 0.2
    %v669 = vmul.f32 %v619, 0.2
    %v670 = vmul.f32 %v621, 0.2
    %v671 = vmul.f32 %v625, 0.2
    %v672 = vmul.f32 %v627, 0.2
    %v673 = vmul.f32 %v631, 0.2
    %v674 = vmul.f32 %v633, 0.2
    %v675 = vmul.f32 %v637, 0.2
    %v676 = vmul.f32 %v639, 0.2
    %v677 = vmul.f32 %v643, 0.2
    %v678 = vmul.f32 %v645, 0.2
    %v679 = vmul.f32 %v649, 0.2
    %v680 = vmul.f32 %v651, 0.2
    %v681 = vsel %vm653, %v613, %v667
    %v682 = vsel %vm654, %v615, %v668
    %v683 = vsel %vm655, %v619, %v669
    %v684 = vsel %vm656, %v621, %v670
    %v685 = vsel %vm657, %v625, %v671
    %v686 = vsel %vm658, %v627, %v672
    %v687 = vsel %vm659, %v631, %v673
    %v688 = vsel %vm660, %v633, %v674
    %v689 = vsel %vm661, %v637, %v675
    %v690 = vsel %vm662, %v639, %v676
    %v691 = vsel %vm663, %v643, %v677
    %v692 = vsel %vm664, %v645, %v678
    %v693 = vsel %vm665, %v649, %v679
    %v694 = vsel %vm666, %v651, %v680
    %vm695 = vcmask 408576
    %v697 = vsel %vm695, %v296, 0
    %vm699 = vcmask 1041408
    %v701 = vsel %vm699, %v693, 0
    %v704 = vsel %vm699, %v694, 0
    %706 = vmatprep.subr.mxu0 %v682
    %707 = vmatpush1.msra.mxu0 %v681
    %708 = vmatprep.subr.mxu0 %v684
    %709 = vmatpush1.msra.mxu0 %v683
    %710 = vmatprep.subr.mxu0 %v686
    %711 = vmatpush1.msra.mxu0 %v685
    %712 = vmatprep.subr.mxu0 %v688
    %713 = vmatpush1.msra.mxu0 %v687
    %714 = vmatprep.subr.mxu0 %v690
    %715 = vmatpush1.msra.mxu0 %v689
    %716 = vmatprep.subr.mxu0 %v692
    %717 = vmatpush1.msra.mxu0 %v691
    %718 = vmatprep.subr.mxu0 %v704
    %719 = vmatpush1.msra.mxu0 %v701
    %720 = vmatprep.subr.mxu0 0.0
    %721 = vmatpush1.msra.mxu0 0.0
    %722 = vmatprep.subr.mxu0 0.0
    %723 = vmatpush1.msra.mxu0 0.0
    %724 = vmatprep.subr.mxu0 0.0
    %725 = vmatpush1.msra.mxu0 0.0
    %726 = vmatprep.subr.mxu0 0.0
    %727 = vmatpush1.msra.mxu0 0.0
    %728 = vmatprep.subr.mxu0 0.0
    %729 = vmatpush1.msra.mxu0 0.0
    %730 = vmatprep.subr.mxu0 0.0
    %731 = vmatpush1.msra.mxu0 0.0
    %732 = vmatprep.subr.mxu0 0.0
    %733 = vmatpush1.msra.mxu0 0.0
    %734 = vmatprep.subr.mxu0 0.0
    %735 = vmatpush1.msra.mxu0 0.0
    %736 = vmatprep.subr.mxu0 0.0
    %737 = vmatpush1.msra.mxu0 0.0
    %738 = vmatprep.subr.mxu0 0.0
    %739 = vmatpush1.msra.mxu0 0.0
    %740 = vmatprep.subr.mxu0 0.0
    %741 = vmatpush1.msra.mxu0 0.0
    %742 = vmatprep.subr.mxu0 0.0
    %743 = vmatpush1.msra.mxu0 0.0
    %744 = vmatprep.subr.mxu0 0.0
    %745 = vmatpush1.msra.mxu0 0.0
    %746 = vmatprep.subr.mxu0 0.0
    %747 = vmatpush1.msra.mxu0 0.0
    %748 = vmatprep.subr.mxu0 0.0
    %749 = vmatpush1.msra.mxu0 0.0
    %750 = vmatprep.subr.mxu0 0.0
    %751 = vmatpush1.msra.mxu0 0.0
    %752 = vmatprep.subr.mxu0 0.0
    %753 = vmatpush1.msra.mxu0 0.0
    %754 = vmatprep.subr.mxu0 0.0
    %755 = vmatpush1.msra.mxu0 0.0
    %756 = vmatprep.subr.mxu0 0.0
    %757 = vmatpush1.msra.mxu0 0.0
    %758 = vmatprep.subr.mxu0 0.0
    %759 = vmatpush1.msra.mxu0 0.0
    %760 = vmatprep.subr.mxu0 0.0
    %761 = vmatpush1.msra.mxu0 0.0
    %762 = vmatprep.subr.mxu0 0.0
    %763 = vmatpush1.msra.mxu0 0.0
    %764 = vmatprep.subr.mxu0 0.0
    %765 = vmatpush1.msra.mxu0 0.0
    %766 = vmatprep.subr.mxu0 0.0
    %767 = vmatpush1.msra.mxu0 0.0
    %768 = vmatprep.subr.mxu0 0.0
    %769 = vmatpush1.msra.mxu0 0.0
    %770 = vmatprep.mubr.f32.mxu0 0.0
    %771 = vmatmul.mubr.f32.gmra.mrb[0].mxu0 %v697
    %v772 = vpop.f32.mrb[0].mxu0
    %v773 = vadd.f32 %v288, %v772
    %v774 = vpop.f32.mrb[0].mxu0
    %v775 = vadd.f32 %v288, %v774
    %776 = vdwg.mxu0
    %v777 = vmul.f32 %v773, 1.442695
    %v778 = vpow.pop %v777
    %v779 = vmul.f32 %v775, 1.442695
    %v780 = vpow.pop %v779
    %v781 = vadd.f32 %v778, 1.0
    %v782 = vadd.f32 %v780, 1.0
    %v783 = vrcp.pop %v781
    %v784 = vmul.f32 1.0, %v783
    %v785 = vrcp.pop %v782
    %v786 = vmul.f32 1.0, %v785
    %v787 = vsub.f32 1.0, %v784
    %v788 = vsub.f32 1.0, %v786
    %v791 = vrot.slane %v787, 7
    %v792 = vrot.slane %v788, 7
    %vm795 = vcmask 1040384
    %v796 = vsel %vm795, %v784, %v791
    %v797 = vsel %vm795, %v786, %v792
    %v800 = vcombine.low %v796, %v797
    %v802 = vunpack.c.l.s4 1983009808
    %v803 = vunpack.c.0.s8 %v802
    %v804 = vlaneseq
    %v805 = vshrl.u32 %v804, 7
    %v806 = vsub.s32 %v803, %v805
    %v807 = vrot.slane %v800, %v806
    %809 = vst [vmem:[#allocation3] sm:$0xf] %v807
    // Predicated region
    $region30: #{tpu_custom_call.1} parent=1 // pred_check
      _
    $region31: #{tpu_custom_call.1} parent=1 // pred_check_branch
      %811 = sbr.rel (0) target = $region33
    $region32: #{tpu_custom_call.1} parent=1 // pred_region
      %s813 = ssub.s32 64, 64
      %814 = vsyncadd [#allocation4], %s813
      %s816 = sshll.u32 [#allocation3], 4
      %s817 = int_to_ptr.vmem [resolvable:$true] %s816
      %819 = dma.vmem_to_hbm [thread:$0]  %s817, 64, %s7, [#allocation4]
    $region33: #{tpu_custom_call.1} parent=1 // pred_fallthru
      _
    // Predicated region
    $region34: #{tpu_custom_call.1} parent=1 // pred_check
      _
    $region35: #{tpu_custom_call.1} parent=1 // pred_check_branch
      %821 = sbr.rel (0) target = $region37
    $region36: #{tpu_custom_call.1} parent=1 // pred_region
      %822 = dma.done [#allocation4], 64
    $region37: #{tpu_custom_call.1} parent=1 // pred_fallthru
      _
    %823 = vsyncpa [#allocation4], 1

</llo_original>
